<compile_context>
chip_gen: v6e
topology: v6e:2x2x1
jax: 0.10.0
libtpu: 0.0.40
codegen_flags: <defaults>
</compile_context>

<pallas_src>
import functools
import jax
import jax.numpy as jnp
from jax import lax
from jax.experimental import pallas as pl
from jax.experimental.pallas import tpu as pltpu


# ----------------------------- Pallas kernel --------------------------------

def _sim_kernel(x_ref, kn_ref, xnorm_ref, sim_ref, acc_ref, *,
                num_tokens, token_tile, mask_tokens):
    """Fused token-sum / L2-normalize / cosine-similarity kernel.

    Grid: (batch tiles ["parallel"], token tiles ["arbitrary", reduction last]).

    x_ref    : (TB, TN, D)   streamed input-embedding tile (f32 or bf16)
    kn_ref   : (P_pad, D)    pre-normalized (s ++ m) prompt keys, zero-padded,
                             resident across all grid steps (constant index_map)
    xnorm_ref: (TB, D)       L2-normalized embedding key (written on last step)
    sim_ref  : (TB, P_pad)   cosine similarities, lane-dense (written on last step)
    acc_ref  : (TB, D) f32   token-sum accumulator scratch
    """
    j = pl.program_id(1)

    @pl.when(j == 0)
    def _init():
        acc_ref[...] = jnp.zeros_like(acc_ref)

    x = x_ref[...]                                           # (TB, TN, D)
    if mask_tokens:
        # Last token tile is partial: zero out-of-range token rows so they do not
        # contaminate the sum (static Python guard; only emitted when needed).
        tok_ids = lax.broadcasted_iota(jnp.int32, (token_tile, 1), 0) + j * token_tile
        valid = (tok_ids < num_tokens)[None, :, :]           # (1, TN, 1)
        x = jnp.where(valid, x, jnp.zeros_like(x))
    # f32 accumulation regardless of the streamed dtype; no full-tile f32 temp.
    acc_ref[...] += jnp.sum(x, axis=1, dtype=jnp.float32)

    @pl.when(j == pl.num_programs(1) - 1)
    def _finalize():
        eps = jnp.float32(1e-12)
        s = acc_ref[...]                                     # token SUM
        # L2 normalization is scale-invariant -> no divide-by-N needed.
        ss = jnp.sum(s * s, axis=-1, keepdims=True)
        xn = s * lax.rsqrt(jnp.maximum(ss, eps))             # (TB, D)
        xnorm_ref[...] = xn
        # NT contraction (contract last dims of both operands) -> MXU directly,
        # no explicit transpose of the (P_pad, D) key tile.
        sim_ref[...] = lax.dot_general(
            xn, kn_ref[...],
            dimension_numbers=(((1,), (1,)), ((), ())),
            preferred_element_type=jnp.float32)


# ----------------------------- tiling / VMEM budgeting ------------------------

def _tpu_vmem_capacity_bytes():
    try:
        info = pltpu.get_tpu_info()
        cap = int(getattr(info, "vmem_capacity_bytes", 0) or 0)
        if cap > 0:
            return cap
    except Exception:
        pass
    return 64 * 1024 * 1024          # conservative (v7x-sized) fallback


def _choose_tiles(B, N, D, x_itemsize):
    """Generation-aware (TB, TN) tile choice.

    The double-buffered x window is budgeted at ~1/3 of physical VMEM
    (≈42 MiB on 128 MiB v5e/v6e, ≈21 MiB on 64 MiB v7x). If even the minimum
    batch tile with the full token axis busts the budget, the token axis is
    tiled instead (accumulator path), so TB never silently blows the budget.
    """
    vmem_cap = _tpu_vmem_capacity_bytes()
    x_budget = max(vmem_cap // 3, 4 * 1024 * 1024)

    min_tb = B if B <= 8 else 8
    row_bytes = N * D * x_itemsize            # one batch row, full token axis

    if 2 * min_tb * row_bytes <= x_budget:
        # Regime A: full token axis per step; grow the batch tile toward budget.
        tn = N
        if B <= 8:
            tb = B                            # block dim == full array dim -> legal
        else:
            tb = x_budget // (2 * row_bytes)
            if B >= 16:
                tb = min(tb, B // 2)          # >=2 batch steps so v7x's 2 TCs both work
            tb = max(8, min(tb, B, 2048))
            tb = (tb // 8) * 8                # 8-aligned second-minor output dim
    else:
        # Regime B: token axis must be tiled (accumulator across the grid).
        tb = min_tb
        tn = x_budget // (2 * tb * D * x_itemsize)
        tn = min(N, max(8, (tn // 8) * 8))
    return tb, tn, vmem_cap


def _vmem_limit_bytes(tb, tn, D, P_pad, x_itemsize, vmem_cap):
    est = (2 * tb * tn * D * x_itemsize       # double-buffered x tile
           + 2 * P_pad * D * 4                # resident keys (conservatively x2)
           + 2 * tb * D * 4                   # x_embed_norm output (double-buffered)
           + 2 * tb * P_pad * 4               # similarity output (double-buffered)
           + tb * D * 4)                      # token-sum accumulator scratch
    limit = max(2 * est, 32 * 1024 * 1024)
    limit = min(limit, (vmem_cap * 9) // 10)
    return int(max(limit, est + 2 * 1024 * 1024))


# ----------------------------- wrappers --------------------------------------

def _l2_normalize(v, eps=1e-12):
    ss = jnp.sum(v * v, axis=-1, keepdims=True)
    return v * lax.rsqrt(jnp.maximum(ss, jnp.float32(eps)))


def similarity_pallas(x_embed, keys_norm_padded, batch_tile, token_tile,
                      vmem_limit_bytes):
    """Returns (x_embed_norm [B, D], similarity [B, P_pad])."""
    B, N, D = x_embed.shape
    P_pad = keys_norm_padded.shape[0]
    grid = (pl.cdiv(B, batch_tile), pl.cdiv(N, token_tile))
    mask_tokens = (N % token_tile) != 0

    kernel = functools.partial(
        _sim_kernel, num_tokens=N, token_tile=token_tile, mask_tokens=mask_tokens)

    out_shapes = (
        jax.ShapeDtypeStruct((B, D), jnp.float32),       # x_embed_norm
        jax.ShapeDtypeStruct((B, P_pad), jnp.float32),   # similarities (padded cols)
    )
    # NOTE: for D < 128 the x_embed_norm store is a masked partial store; only
    # worth padding D at the wrapper boundary if such configs dominate.
    return pl.pallas_call(
        kernel,
        out_shape=out_shapes,
        grid=grid,
        in_specs=[
            pl.BlockSpec((batch_tile, token_tile, D), lambda i, j: (i, j, 0)),  # streamed
            pl.BlockSpec((P_pad, D), lambda i, j: (0, 0)),                      # resident keys
        ],
        out_specs=(
            pl.BlockSpec((batch_tile, D), lambda i, j: (i, 0)),
            pl.BlockSpec((batch_tile, P_pad), lambda i, j: (i, 0)),
        ),
        scratch_shapes=[pltpu.VMEM((batch_tile, D), jnp.float32)],
        compiler_params=pltpu.CompilerParams(
            dimension_semantics=("parallel", "arbitrary"),
            vmem_limit_bytes=vmem_limit_bytes),
    )(x_embed, keys_norm_padded)


# ----------------------------- module -----------------------------------------

class SPromptWoTypeJAX:
    """JAX/Pallas port of SPrompt_Wo_type (prompt_pool branch, prefix-tune prompts)."""

    def __init__(self, key, embed_dim=32, s_length=5, m_length=5,
                 s_pool_size=10, m_pool_size=10, s_top_k=3, m_top_k=3,
                 num_layers=1, num_heads=4):
        assert embed_dim % num_heads == 0
        self.embed_dim = embed_dim
        self.s_top_k = s_top_k
        self.m_top_k = m_top_k
        head_dim = embed_dim // num_heads
        k1, k2, k3, k4 = jax.random.split(key, 4)
        # nn.init.uniform_(-1, 1) equivalents (deterministic, synthetic init).
        self.s_prompt = jax.random.uniform(
            k1, (num_layers * 2, s_pool_size, s_length, num_heads, head_dim),
            dtype=jnp.float32, minval=-1.0, maxval=1.0)
        self.m_prompt = jax.random.uniform(
            k2, (num_layers * 2, m_pool_size, m_length, num_heads, head_dim),
            dtype=jnp.float32, minval=-1.0, maxval=1.0)
        self.s_prompt_key = jax.random.uniform(
            k3, (s_pool_size, embed_dim), dtype=jnp.float32, minval=-1.0, maxval=1.0)
        self.m_prompt_key = jax.random.uniform(
            k4, (m_pool_size, embed_dim), dtype=jnp.float32, minval=-1.0, maxval=1.0)

        # Hoisted (constant) key-pool concat + lane-dense zero-pad: one resident
        # key block for the kernel, one normalization per forward, lane-dense store.
        self._Ps = s_pool_size
        self._Pm = m_pool_size
        p_total = s_pool_size + m_pool_size
        self._P_pad = ((p_total + 127) // 128) * 128
        keys_all = jnp.concatenate([self.s_prompt_key, self.m_prompt_key], axis=0)
        self.keys_padded = jnp.pad(keys_all, ((0, self._P_pad - p_total), (0, 0)))

    @functools.partial(jax.jit, static_argnums=0)
    def forward(self, x_embed):
        out = {}
        B, N, D = x_embed.shape
        Ps, Pm, P_pad = self._Ps, self._Pm, self._P_pad

        # Single key normalization (tiny), reused for the kernel input AND the
        # output dict; zero-pad rows normalize to exactly 0, so padded similarity
        # columns are 0 and are sliced off before top_k.
        keys_norm_padded = _l2_normalize(self.keys_padded)       # (P_pad, D)
        s_prompt_key_norm = keys_norm_padded[:Ps]
        m_prompt_key_norm = keys_norm_padded[Ps:Ps + Pm]

        batch_tile, token_tile, vmem_cap = _choose_tiles(
            B, N, D, x_embed.dtype.itemsize)
        vmem_limit = _vmem_limit_bytes(
            batch_tile, token_tile, D, P_pad, x_embed.dtype.itemsize, vmem_cap)

        # ---- fused Pallas kernel: token sum / l2-norm / similarity matmul ----
        # (x_embed may be streamed in bf16 by the caller; accumulation stays f32.)
        x_embed_norm, sim_all = similarity_pallas(
            x_embed, keys_norm_padded, batch_tile, token_tile, vmem_limit)
        s_similarity = sim_all[:, :Ps]
        m_similarity = sim_all[:, Ps:Ps + Pm]

        out['s_similarity'] = s_similarity
        out['t_similarity'] = m_similarity

        # ---- top-k selection (glue) ----
        s_vals, s_idx = jax.lax.top_k(s_similarity, self.s_top_k)   # (B, Ks)
        m_vals, m_idx = jax.lax.top_k(m_similarity, self.m_top_k)   # (B, Km)
        out['s_prompt_idx'] = s_idx
        out['m_prompt_idx'] = m_idx
        # TODO(synk): batchwise_prompt=True (unique/counts re-vote) not implemented.

        # ---- pull-constraint reduce_sim: algebraically == sum of top-k sims / B ----
        out['s_reduce_sim'] = jnp.sum(s_vals) / B
        out['m_reduce_sim'] = jnp.sum(m_vals) / B

        # ---- prompt gather + reshape (glue; pure indexing, matches torch.reshape) ----
        s_raw = jnp.take(self.s_prompt, s_idx, axis=1)   # (2L, B, Ks, len, H, hd)
        dl, bsz, ks, slen, nh, hd = s_raw.shape
        s_batched_prompt = s_raw.reshape(dl, bsz, nh, ks * slen, hd)
        m_raw = jnp.take(self.m_prompt, m_idx, axis=1)
        dl, bsz, km, mlen, nh, hd = m_raw.shape
        m_batched_prompt = m_raw.reshape(dl, bsz, nh, km * mlen, hd)

        # ---- selected-key outputs (tiny gathers) ----
        s_batched_key_norm = jnp.take(s_prompt_key_norm, s_idx, axis=0)  # (B, Ks, D)
        m_batched_key_norm = jnp.take(m_prompt_key_norm, m_idx, axis=0)  # (B, Km, D)

        out['s_selected_key'] = s_batched_key_norm
        out['s_prompt_key_norm'] = s_prompt_key_norm
        out['m_selected_key'] = m_batched_key_norm
        out['m_prompt_key_norm'] = m_prompt_key_norm
        out['x_embed_norm'] = x_embed_norm

        out['s_batched_prompt'] = s_batched_prompt
        out['m_batched_prompt'] = m_batched_prompt
        return out


# ----------------------------- reference + main --------------------------------

def _reference(x_embed, module):
    """Pure-JAX reference of the same forward (torch-formula reduce_sim)."""
    eps = 1e-12

    def l2n(v):
        ss = jnp.sum(v * v, axis=-1, keepdims=True)
        return v * lax.rsqrt(jnp.maximum(ss, eps))

    x_mean = jnp.mean(x_embed, axis=1)
    xn = l2n(x_mean)
    skn = l2n(module.s_prompt_key)
    mkn = l2n(module.m_prompt_key)
    s_sim = xn @ skn.T
    m_sim = xn @ mkn.T
    _, s_idx = jax.lax.top_k(s_sim, module.s_top_k)
    _, m_idx = jax.lax.top_k(m_sim, module.m_top_k)
    # torch formula: sum(selected_key_norm * x_norm[:, None, :]) / B
    s_red = jnp.sum(jnp.take(skn, s_idx, axis=0) * xn[:, None, :]) / x_mean.shape[0]
    m_red = jnp.sum(jnp.take(mkn, m_idx, axis=0) * xn[:, None, :]) / x_mean.shape[0]
    return xn, s_sim, m_sim, s_red, m_red


if __name__ == "__main__":
    key = jax.random.PRNGKey(0)
    k_param, k_x = jax.random.split(key)

    B, N, D = 2, 8, 32
    module = SPromptWoTypeJAX(k_param, embed_dim=D, s_length=5, m_length=5,
                              s_pool_size=10, m_pool_size=10,
                              s_top_k=3, m_top_k=3, num_layers=1, num_heads=4)
    x_embed = jax.random.normal(k_x, (B, N, D), dtype=jnp.float32)

    out = module.forward(x_embed)
    jax.block_until_ready(out)

    # sanity check against a pure-JAX reference
    xn_ref, s_sim_ref, m_sim_ref, s_red_ref, m_red_ref = _reference(x_embed, module)
    assert jnp.allclose(out['x_embed_norm'], xn_ref, atol=1e-5)
    assert jnp.allclose(out['s_similarity'], s_sim_ref, atol=1e-5)
    assert jnp.allclose(out['t_similarity'], m_sim_ref, atol=1e-5)
    assert jnp.allclose(out['s_reduce_sim'], s_red_ref, atol=1e-5)
    assert jnp.allclose(out['m_reduce_sim'], m_red_ref, atol=1e-5)
    assert out['s_batched_prompt'].shape == (2, B, 4, 3 * 5, 8)
    assert out['m_batched_prompt'].shape == (2, B, 4, 3 * 5, 8)
    assert out['s_selected_key'].shape == (B, 3, D)
    assert out['m_selected_key'].shape == (B, 3, D)

    print("KERNEL_OK")
</pallas_src>

<mosaic_0001>
module attributes {stable_mosaic.version = 11 : i64} {
  func.func @_sim_kernel(%arg0: i32, %arg1: i32, %arg2: memref<2x8x32xf32, #tpu.memory_space<vmem>>, %arg3: memref<128x32xf32, #tpu.memory_space<vmem>>, %arg4: memref<2x32xf32, #tpu.memory_space<vmem>>, %arg5: memref<2x128xf32, #tpu.memory_space<vmem>>, %arg6: memref<2x32xf32, #tpu.memory_space<vmem>>) attributes {dimension_semantics = [#tpu.dimension_semantics<parallel>, #tpu.dimension_semantics<arbitrary>], iteration_bounds = array<i64: 1, 1>, scalar_prefetch = 0 : i64, scratch_operands = 1 : i64, tpu.core_type = #tpu.core_type<tc>, window_params = [{transform_indices = @transform_0, window_bounds = array<i64: 2, 8, 32>}, {pipeline_mode = #tpu.pipeline_mode<synchronous>, transform_indices = @transform_1, window_bounds = array<i64: 128, 32>}, {transform_indices = @transform_2, window_bounds = array<i64: 2, 32>}, {transform_indices = @transform_3, window_bounds = array<i64: 2, 128>}]} {
    %c0_i32 = arith.constant 0 : i32
    %0 = arith.cmpi eq, %arg1, %c0_i32 : i32
    %1 = arith.extui %0 : i1 to i32
    %c0_i32_0 = arith.constant 0 : i32
    %2 = arith.cmpi ne, %1, %c0_i32_0 : i32
    scf.if %2 {
      %cst_9 = arith.constant 0.000000e+00 : f32
      %11 = vector.broadcast %cst_9 : f32 to vector<2x32xf32>
      %c0_10 = arith.constant 0 : index
      %c0_11 = arith.constant 0 : index
      %12 = vector.load %arg6[%c0_10, %c0_11] : memref<2x32xf32, #tpu.memory_space<vmem>>, vector<2x32xf32>
      tpu.vector_store %arg6[%c0_10, %c0_11], %11 {strides = array<i32>} : memref<2x32xf32, #tpu.memory_space<vmem>>, vector<2x32xf32>,
    } else {
    }
    %c0 = arith.constant 0 : index
    %c0_1 = arith.constant 0 : index
    %c0_2 = arith.constant 0 : index
    %3 = vector.load %arg2[%c0, %c0_1, %c0_2] : memref<2x8x32xf32, #tpu.memory_space<vmem>>, vector<2x8x32xf32>
    %c0_3 = arith.constant 0 : index
    %c0_4 = arith.constant 0 : index
    %4 = vector.load %arg6[%c0_3, %c0_4] : memref<2x32xf32, #tpu.memory_space<vmem>>, vector<2x32xf32>
    %cst = arith.constant dense<0.000000e+00> : vector<2x32xf32>
    %5 = vector.multi_reduction <add>, %3, %cst [1] : vector<2x8x32xf32> to vector<2x32xf32>
    %6 = arith.addf %4, %5 : vector<2x32xf32>
    %c0_5 = arith.constant 0 : index
    %c0_6 = arith.constant 0 : index
    %7 = vector.load %arg6[%c0_5, %c0_6] : memref<2x32xf32, #tpu.memory_space<vmem>>, vector<2x32xf32>
    tpu.vector_store %arg6[%c0_5, %c0_6], %6 {strides = array<i32>} : memref<2x32xf32, #tpu.memory_space<vmem>>, vector<2x32xf32>,
    %c0_i32_7 = arith.constant 0 : i32
    %8 = arith.cmpi eq, %arg1, %c0_i32_7 : i32
    %9 = arith.extui %8 : i1 to i32
    %c0_i32_8 = arith.constant 0 : i32
    %10 = arith.cmpi ne, %9, %c0_i32_8 : i32
    scf.if %10 {
      %c0_9 = arith.constant 0 : index
      %c0_10 = arith.constant 0 : index
      %11 = vector.load %arg6[%c0_9, %c0_10] : memref<2x32xf32, #tpu.memory_space<vmem>>, vector<2x32xf32>
      %12 = arith.mulf %11, %11 : vector<2x32xf32>
      %cst_11 = arith.constant dense<0.000000e+00> : vector<2xf32>
      %13 = vector.multi_reduction <add>, %12, %cst_11 [1] : vector<2x32xf32> to vector<2xf32>
      %14 = vector.shape_cast %13 : vector<2xf32> to vector<2x1xf32>
      %cst_12 = arith.constant 9.99999996E-13 : f32
      %15 = vector.broadcast %cst_12 : f32 to vector<2x1xf32>
      %16 = arith.maximumf %14, %15 : vector<2x1xf32>
      %17 = math.rsqrt %16 : vector<2x1xf32>
      %18 = vector.broadcast %17 : vector<2x1xf32> to vector<2x32xf32>
      %19 = arith.mulf %11, %18 : vector<2x32xf32>
      %c0_13 = arith.constant 0 : index
      %c0_14 = arith.constant 0 : index
      %20 = vector.load %arg4[%c0_13, %c0_14] : memref<2x32xf32, #tpu.memory_space<vmem>>, vector<2x32xf32>
      tpu.vector_store %arg4[%c0_13, %c0_14], %19 {strides = array<i32>} : memref<2x32xf32, #tpu.memory_space<vmem>>, vector<2x32xf32>,
      %c0_15 = arith.constant 0 : index
      %c0_16 = arith.constant 0 : index
      %21 = vector.load %arg3[%c0_15, %c0_16] : memref<128x32xf32, #tpu.memory_space<vmem>>, vector<128x32xf32>
      %cst_17 = arith.constant dense<0.000000e+00> : vector<2x128xf32>
      %22 = tpu.matmul %19, %21, %cst_17 {dimension_numbers = #tpu.dot_dimension_numbers<[1], [1], [0], [0], [0, 0, 1, 0], [], []>} : vector<2x32xf32>, vector<128x32xf32>, vector<2x128xf32> -> vector<2x128xf32>
      %c0_18 = arith.constant 0 : index
      %c0_19 = arith.constant 0 : index
      %23 = vector.load %arg5[%c0_18, %c0_19] : memref<2x128xf32, #tpu.memory_space<vmem>>, vector<2x128xf32>
      tpu.vector_store %arg5[%c0_18, %c0_19], %22 {strides = array<i32>} : memref<2x128xf32, #tpu.memory_space<vmem>>, vector<2x128xf32>,
    } else {
    }
    return
  }
  func.func @transform_0(%arg0: i32, %arg1: i32) -> (i32, i32, i32) {
    %c0_i32 = arith.constant 0 : i32
    %c0_i32_0 = arith.constant 0 : i32
    return %arg0, %arg1, %c0_i32 : i32, i32, i32
  }
  func.func @transform_1(%arg0: i32, %arg1: i32) -> (i32, i32) {
    %c0_i32 = arith.constant 0 : i32
    %c0_i32_0 = arith.constant 0 : i32
    %c0_i32_1 = arith.constant 0 : i32
    return %c0_i32, %c0_i32_0 : i32, i32
  }
  func.func @transform_2(%arg0: i32, %arg1: i32) -> (i32, i32) {
    %c0_i32 = arith.constant 0 : i32
    %c0_i32_0 = arith.constant 0 : i32
    return %arg0, %c0_i32 : i32, i32
  }
  func.func @transform_3(%arg0: i32, %arg1: i32) -> (i32, i32) {
    %c0_i32 = arith.constant 0 : i32
    %c0_i32_0 = arith.constant 0 : i32
    return %arg0, %c0_i32 : i32, i32
  }
}

</mosaic_0001>

<llo_original>
// kernel: forward.1
$region0: #{forward.1}
  #allocation0 [shape = 'u32[]', space=smem, size = 0x4, offset = 0x4, fixed_abs, tag = 'smem constant byte address 0x4 - core index']
  #allocation1 [shape = 'u32[144,128]{1,0:T(1,128)}', space=vmem, size = 0x12000, scoped, tag = 'internal scratch']
  #allocation2 [shape = 'f32[2,32]{1,0:T(2,128)}', space=vmem, size = 0x400, scoped, tag = 'scratch operand']
  %s0 = inlined_call_operand.hbm [shape: f32[2,8,32], index: 0, kind: input, shape index: {}]
  %s1 = inlined_call_operand.hbm [shape: f32[128,32], index: 1, kind: input, shape index: {}]
  %s2 = inlined_call_operand.hbm [shape: f32[2,32], index: 2, kind: output, shape index: {0}]
  %s3 = inlined_call_operand.vmem [shape: f32[2,128], index: 3, kind: output, shape index: {1}]
  %4 = xla_tuple %s2, %s3
  %s5 = sld [smem:[#allocation0]]
  $region42: #{forward.1} parent=0
    _
  %s7 = ssub.s32 1, %s5
  %s8 = scalar_select 0, %s7, %s5
  $region1: #{forward.1} parent=0
    #allocation3 [shape = 'u8[8192]{0}', space=vmem, size = 0x2000, scoped, tag = 'input window, operand 0, single buffered']
    #allocation4 [shape = 's32[1]{0}', space=sflag, size = 0x4, scoped, tag = 'scoped memory for forward.1']
    #allocation5 [shape = 's32[1]{0}', space=sflag, size = 0x4, scoped, tag = 'scoped memory for forward.1']
    #allocation6 [shape = 'u8[65536]{0}', space=vmem, size = 0x10000, scoped, tag = 'input window, operand 1, single buffered']
    #allocation7 [shape = 's32[1]{0}', space=sflag, size = 0x4, scoped, tag = 'scoped memory for forward.1']
    #allocation8 [shape = 'u8[1024]{0}', space=vmem, size = 0x400, scoped, tag = 'output window, operand 0, single buffered']
    %9 = vsyncpa [#allocation4], 0
    %10 = vsyncpa [#allocation7], 0
    %11 = vsyncpa [#allocation5], 0
    // Predicated region
    $region2: #{forward.1} parent=1 // pred_check
      _
    $region3: #{forward.1} parent=1 // pred_check_branch
      %13 = sbr.rel (0) target = $region5
    $region4: #{forward.1} parent=1 // pred_region
      %s15 = ssub.s32 256, 256
      %16 = vsyncadd [#allocation4], %s15
      %s17 = sshll.u32 [#allocation3], 4
      %s18 = int_to_ptr.vmem [resolvable:$true] %s17
      %23 = dma.hbm_to_vmem [thread:$0]  %s0, 256, %s18, [#allocation4], 128, 128, 8
    $region5: #{forward.1} parent=1 // pred_fallthru
      _
    // Predicated region
    $region6: #{forward.1} parent=1 // pred_check
      _
    $region7: #{forward.1} parent=1 // pred_check_branch
      %25 = sbr.rel (0) target = $region9
    $region8: #{forward.1} parent=1 // pred_region
      %s27 = ssub.s32 2048, 2048
      %28 = vsyncadd [#allocation7], %s27
      %s29 = sshll.u32 [#allocation6], 4
      %s30 = int_to_ptr.vmem [resolvable:$true] %s29
      %35 = dma.hbm_to_vmem [thread:$0]  %s1, 2048, %s30, [#allocation7], 128, 128, 8
    $region9: #{forward.1} parent=1 // pred_fallthru
      _
    // Predicated region
    $region10: #{forward.1} parent=1 // pred_check
      _
    $region11: #{forward.1} parent=1 // pred_check_branch
      %37 = sbr.rel (0) target = $region13
    $region12: #{forward.1} parent=1 // pred_region
      %38 = dma.done [#allocation4], 256
    $region13: #{forward.1} parent=1 // pred_fallthru
      _
    // Predicated region
    $region14: #{forward.1} parent=1 // pred_check
      _
    $region15: #{forward.1} parent=1 // pred_check_branch
      %40 = sbr.rel (0) target = $region17
    $region16: #{forward.1} parent=1 // pred_region
      %41 = dma.done [#allocation7], 2048
    $region17: #{forward.1} parent=1 // pred_fallthru
      _
    %p42 = scmp.eq.s32.totalorder 0, 0
    // Predicated region
    $region18: #{forward.1} parent=1 // pred_check
      %p43 = pneg %p42
    $region19: #{forward.1} parent=1 // pred_check_branch
      %45 = sbr.rel (%p43) target = $region21
    $region20: #{forward.1} parent=1 // pred_region
      %vm46 = vcmask 254976
      %47 = vst.msk [vmem:[#allocation2] sm:$0x3] %vm46, 0.0
    $region21: #{forward.1} parent=1 // pred_fallthru
      _
    %v48 = vld [vmem:[#allocation3] sm:$0xff]
    %v49 = vld [vmem:[#allocation3 + $0x8] sm:$0xff]
    %v50 = vld [vmem:[#allocation2] sm:$0x3]
    %vm51 = vcmask 261120
    %v52 = vsel %vm51, %v48, 0.0
    %v53 = vrot.slane %v52, 4
    %v54 = vadd.f32 %v52, %v53
    %v55 = vrot.slane %v54, 2
    %v56 = vadd.f32 %v54, %v55
    %v57 = vrot.slane %v56, 1
    %v58 = vadd.f32 %v56, %v57
    %v59 = vsel %vm51, %v49, 0.0
    %v60 = vrot.slane %v59, 4
    %v61 = vadd.f32 %v59, %v60
    %v62 = vrot.slane %v61, 2
    %v63 = vadd.f32 %v61, %v62
    %v64 = vrot.slane %v63, 1
    %v65 = vadd.f32 %v63, %v64
    %vm68 = vcmask 1041409
    %v69 = vsel %vm68, %v65, %v58
    %v71 = vadd.f32 %v50, %v69
    %vm72 = vcmask 254976
    %73 = vst.msk [vmem:[#allocation2] sm:$0x3] %vm72, %v71
    // Predicated region
    $region22: #{forward.1} parent=1 // pred_check
      %p74 = pneg %p42
    $region23: #{forward.1} parent=1 // pred_check_branch
      %76 = sbr.rel (%p74) target = $region25
    $region24: #{forward.1} parent=1 // pred_region
      %v77 = vld [vmem:[#allocation2] sm:$0x3]
      %v78 = vmul.f32 %v77, %v77
      %v79 = vsel %vm72, %v78, 0.0
      %80 = vadd.xlane.f32.xlu0 %v79
      %v81 = vpop.xlane.xlu0 %80
      %v82 = vmax.f32 %v81, 1e-12
      %v83 = vrsqrt.pop %v82
      %v84 = vmul.f32 %v77, %v83
      %85 = vst.msk [vmem:[#allocation8] sm:$0x3] %vm72, %v84
      %v86 = vld [vmem:[#allocation6] sm:$0xff]
      %v87 = vld [vmem:[#allocation6 + $0x8] sm:$0xff]
      %v88 = vld [vmem:[#allocation6 + $0x10] sm:$0xff]
      %v89 = vld [vmem:[#allocation6 + $0x18] sm:$0xff]
      %v90 = vld [vmem:[#allocation6 + $0x20] sm:$0xff]
      %v91 = vld [vmem:[#allocation6 + $0x28] sm:$0xff]
      %v92 = vld [vmem:[#allocation6 + $0x30] sm:$0xff]
      %v93 = vld [vmem:[#allocation6 + $0x38] sm:$0xff]
      %v94 = vld [vmem:[#allocation6 + $0x40] sm:$0xff]
      %v95 = vld [vmem:[#allocation6 + $0x48] sm:$0xff]
      %v96 = vld [vmem:[#allocation6 + $0x50] sm:$0xff]
      %v97 = vld [vmem:[#allocation6 + $0x58] sm:$0xff]
      %v98 = vld [vmem:[#allocation6 + $0x60] sm:$0xff]
      %v99 = vld [vmem:[#allocation6 + $0x68] sm:$0xff]
      %v100 = vld [vmem:[#allocation6 + $0x70] sm:$0xff]
      %v101 = vld [vmem:[#allocation6 + $0x78] sm:$0xff]
      %v103 = vsel %vm51, %v84, 0
      %v106 = vsel %vm51, %v86, 0
      %v109 = vsel %vm51, %v87, 0
      %v112 = vsel %vm51, %v88, 0
      %v115 = vsel %vm51, %v89, 0
      %v118 = vsel %vm51, %v90, 0
      %v121 = vsel %vm51, %v91, 0
      %v124 = vsel %vm51, %v92, 0
      %v127 = vsel %vm51, %v93, 0
      %v130 = vsel %vm51, %v94, 0
      %v133 = vsel %vm51, %v95, 0
      %v136 = vsel %vm51, %v96, 0
      %v139 = vsel %vm51, %v97, 0
      %v142 = vsel %vm51, %v98, 0
      %v145 = vsel %vm51, %v99, 0
      %v148 = vsel %vm51, %v100, 0
      %v151 = vsel %vm51, %v101, 0
      %153 = vmatprep.subr.mxu0 0.0
      %154 = vmatpush1.xpose.msra.mxu0 %v151
      %155 = vmatprep.subr.mxu0 0.0
      %156 = vmatpush1.xpose.msra.mxu0 %v148
      %157 = vmatprep.subr.mxu0 0.0
      %158 = vmatpush1.xpose.msra.mxu0 %v145
      %159 = vmatprep.subr.mxu0 0.0
      %160 = vmatpush1.xpose.msra.mxu0 %v142
      %161 = vmatprep.subr.mxu0 0.0
      %162 = vmatpush1.xpose.msra.mxu0 %v139
      %163 = vmatprep.subr.mxu0 0.0
      %164 = vmatpush1.xpose.msra.mxu0 %v136
      %165 = vmatprep.subr.mxu0 0.0
      %166 = vmatpush1.xpose.msra.mxu0 %v133
      %167 = vmatprep.subr.mxu0 0.0
      %168 = vmatpush1.xpose.msra.mxu0 %v130
      %169 = vmatprep.subr.mxu0 0.0
      %170 = vmatpush1.xpose.msra.mxu0 %v127
      %171 = vmatprep.subr.mxu0 0.0
      %172 = vmatpush1.xpose.msra.mxu0 %v124
      %173 = vmatprep.subr.mxu0 0.0
      %174 = vmatpush1.xpose.msra.mxu0 %v121
      %175 = vmatprep.subr.mxu0 0.0
      %176 = vmatpush1.xpose.msra.mxu0 %v118
      %177 = vmatprep.subr.mxu0 0.0
      %178 = vmatpush1.xpose.msra.mxu0 %v115
      %179 = vmatprep.subr.mxu0 0.0
      %180 = vmatpush1.xpose.msra.mxu0 %v112
      %181 = vmatprep.subr.mxu0 0.0
      %182 = vmatpush1.xpose.msra.mxu0 %v109
      %183 = vmatprep.subr.mxu0 0.0
      %184 = vmatpush1.xpose.msra.mxu0 %v106
      %185 = vmatprep.subr.mxu0 0.0
      %186 = vmatpush2.xpose.msra.mxu0 0.0
      %187 = vmatprep.subr.mxu0 0.0
      %188 = vmatpush2.xpose.msra.mxu0 0.0
      %189 = vmatprep.subr.mxu0 0.0
      %190 = vmatpush2.xpose.msra.mxu0 0.0
      %191 = vmatprep.subr.mxu0 0.0
      %192 = vmatpush2.xpose.msra.mxu0 0.0
      %193 = vmatprep.subr.mxu0 0.0
      %194 = vmatpush2.xpose.msra.mxu0 0.0
      %195 = vmatprep.subr.mxu0 0.0
      %196 = vmatpush2.xpose.msra.mxu0 0.0
      %197 = vmatprep.subr.mxu0 0.0
      %198 = vmatpush2.xpose.msra.mxu0 0.0
      %199 = vmatprep.subr.mxu0 0.0
      %200 = vmatpush2.xpose.msra.mxu0 0.0
      %201 = vmatprep.subr.mxu0 0.0
      %202 = vmatpush2.xpose.msra.mxu0 0.0
      %203 = vmatprep.subr.mxu0 0.0
      %204 = vmatpush2.xpose.msra.mxu0 0.0
      %205 = vmatprep.subr.mxu0 0.0
      %206 = vmatpush2.xpose.msra.mxu0 0.0
      %207 = vmatprep.subr.mxu0 0.0
      %208 = vmatpush2.xpose.msra.mxu0 0.0
      %209 = vmatprep.subr.mxu0 0.0
      %210 = vmatpush2.xpose.msra.mxu0 0.0
      %211 = vmatprep.subr.mxu0 0.0
      %212 = vmatpush2.xpose.msra.mxu0 0.0
      %213 = vmatprep.subr.mxu0 0.0
      %214 = vmatpush2.xpose.msra.mxu0 0.0
      %215 = vmatprep.subr.mxu0 0.0
      %216 = vmatpush2.xpose.msra.mxu0 0.0
      %217 = vmatprep.mubr.f32.mxu0 0.0
      %218 = vmatmul.mubr.f32.gmra.mxu0 %v103
      %v219 = vpop.f32.mrf.mxu0
      %v220 = vadd.f32 0.0, %v219
      %v221 = vpop.f32.mrf.mxu0
      %222 = vdwg.mxu0
      %223 = vst [vmem:[%s3] sm:$0x3] %v220
    $region25: #{forward.1} parent=1 // pred_fallthru
      _
    // Predicated region
    $region26: #{forward.1} parent=1 // pred_check
      _
    $region27: #{forward.1} parent=1 // pred_check_branch
      %225 = sbr.rel (0) target = $region29
    $region28: #{forward.1} parent=1 // pred_region
      %s227 = ssub.s32 32, 32
      %228 = vsyncadd [#allocation5], %s227
      %s230 = sshll.u32 [#allocation8], 4
      %s231 = int_to_ptr.vmem [resolvable:$true] %s230
      %233 = dma.vmem_to_hbm [thread:$0]  %s231, 32, %s2, [#allocation5]
    $region29: #{forward.1} parent=1 // pred_fallthru
      _
    // Predicated region
    $region30: #{forward.1} parent=1 // pred_check
      _
    $region31: #{forward.1} parent=1 // pred_check_branch
      %235 = sbr.rel (0) target = $region33
    $region32: #{forward.1} parent=1 // pred_region
      _
    $region33: #{forward.1} parent=1 // pred_fallthru
      _
    // Predicated region
    $region34: #{forward.1} parent=1 // pred_check
      _
    $region35: #{forward.1} parent=1 // pred_check_branch
      %237 = sbr.rel (0) target = $region37
    $region36: #{forward.1} parent=1 // pred_region
      %238 = dma.done [#allocation5], 32
    $region37: #{forward.1} parent=1 // pred_fallthru
      _
    // Predicated region
    $region38: #{forward.1} parent=1 // pred_check
      _
    $region39: #{forward.1} parent=1 // pred_check_branch
      %240 = sbr.rel (0) target = $region41
    $region40: #{forward.1} parent=1 // pred_region
      _
    $region41: #{forward.1} parent=1 // pred_fallthru
      _
    %241 = vsyncpa [#allocation4], 1
    %242 = vsyncpa [#allocation7], 1
    %243 = vsyncpa [#allocation5], 1

</llo_original>
